<compile_context>
chip_gen: v5e
topology: v5e:2x2
jax: 0.10.0
libtpu: 0.0.40
codegen_flags: <defaults>
</compile_context>

<pallas_src>
import jax
import jax.numpy as jnp
from jax.experimental import pallas as pl
from jax.experimental.pallas import tpu as pltpu


def _seq_ce_token_kernel(logits_ref, tgt_ref, out_ref):
    """Per-token masked cross-entropy.

    logits_ref: (rows, V) native dtype (f32/bf16), vocab on the lane axis.
    tgt_ref   : (rows, 1) int32; negative => token contributes 0 loss
                (ignore_index, position >= valid_length, or tile padding).
    out_ref   : (rows, 1) float32 per-token loss.
    """
    x = logits_ref[...]                      # native dtype; no full-tile f32 copy
    tgt = tgt_ref[...]                       # (rows, 1) int32

    # Numerically stable log-sum-exp over the vocab (lane) axis.  max / sub /
    # exp stay in the native dtype (bf16 on bf16 inputs); the sum-of-exp, log
    # and loss are accumulated in f32.
    m = jnp.max(x, axis=-1, keepdims=True)
    shifted = x - m
    sum_exp = jnp.sum(jnp.exp(shifted), axis=-1, keepdims=True, dtype=jnp.float32)
    lse = jnp.log(sum_exp)                                           # (rows, 1) f32

    # Target-logit gather: (1, V) lane iota broadcast-compared against targets.
    # Exactly one lane per row can match, so the native-dtype sum is exact.
    lane_ids = jax.lax.broadcasted_iota(jnp.int32, (1, x.shape[-1]), 1)
    onehot = lane_ids == tgt                                         # (rows, V) bool
    tgt_shifted = jnp.sum(jnp.where(onehot, shifted, 0), axis=-1,
                          keepdims=True).astype(jnp.float32)         # (rows, 1) f32

    # Single combined mask.  Select (not multiply) so garbage rows of a
    # partial last logits block cannot leak inf/NaN into the output.
    out_ref[...] = jnp.where(tgt >= 0, lse - tgt_shifted, 0.0)


def _vmem_capacity_bytes():
    # v5e / v6e: 128 MiB per TensorCore; v7x: 64 MiB.  Conservative fallback.
    try:
        cap = int(pltpu.get_tpu_info().vmem_capacity_bytes)
        if cap > 0:
            return cap
    except Exception:
        pass
    return 64 << 20


def _choose_row_tile(n_tokens, vocab, itemsize, ws_budget_bytes, max_rows=4096):
    """Token rows per grid step: multiple of 8 (full sublanes), sized so the
    per-step working set fits ws_budget_bytes.

    Per-row cost model: 2x double-buffered logits row (native dtype)
    + ~3 live full-width temporaries (shifted / exp / one-hot select)
    + one f32-width temporary (f32 exp accumulation on the bf16 path)
    + lane-padded (rows, 1) target/output buffers (4 bufs x 128 lanes x 4 B).
    """
    if n_tokens <= 8:
        return int(n_tokens)
    bytes_per_row = vocab * itemsize * 5 + vocab * 4 + 2048
    rows = ws_budget_bytes // bytes_per_row
    rows = int(max(8, min(rows, max_rows, n_tokens)))
    if rows < n_tokens:
        rows = max(8, (rows // 8) * 8)
    return rows


def sequence_length_cross_entropy_loss(inputs, targets, valid_lengths, *, row_tile=None):
    """inputs: (S, B, V) float logits (f32 or bf16 -- bf16 is the fast path);
    targets: (B, S) int (ignore_index = -100); valid_lengths: (B,) int.
    Returns (B,) float32 masked-mean cross-entropy (mean over the FULL S).

    Note: targets >= V silently contribute `lse` and other negative targets
    contribute 0 (PyTorch would raise); inputs are assumed trusted.
    """
    seq_len, batch, vocab = inputs.shape
    n_tok = seq_len * batch
    itemsize = jnp.dtype(inputs.dtype).itemsize

    # (S, B, V) -> (S*B, V): free metadata reshape of a row-major array;
    # token rows land on sublanes (full utilisation even for batch < 8).
    logits2d = inputs.reshape(n_tok, vocab)

    # Fold ignore_index + valid-length masks into the target ids (negative
    # target => zero loss).  Tiny (S, B)-sized wrapper work.
    tgt_sb = jnp.transpose(targets.astype(jnp.int32), (1, 0))          # (S, B)
    pos = jax.lax.broadcasted_iota(jnp.int32, (seq_len, batch), 0)
    keep = (tgt_sb != -100) & (pos < valid_lengths.astype(jnp.int32)[None, :])
    tgt_tok = jnp.where(keep, tgt_sb, -1).reshape(n_tok, 1)            # (N, 1)

    # Generation-aware sizing (v5e/v6e: 128 MiB VMEM, v7x: 64 MiB).
    cap = _vmem_capacity_bytes()
    vmem_limit = min(int(0.72 * cap), cap - (2 << 20))
    if row_tile is None:
        row_tile = _choose_row_tile(n_tok, vocab, itemsize, int(0.6 * vmem_limit))
    row_tile = int(row_tile)
    if row_tile >= n_tok:
        row_tile = n_tok
    else:
        row_tile = max(8, (row_tile // 8) * 8)
        row_tile = min(row_tile, n_tok)

    num_tiles = pl.cdiv(n_tok, row_tile)
    n_pad = num_tiles * row_tile
    if n_pad > n_tok:
        # Pad targets with -1 so the garbage rows of the last (partial)
        # logits block contribute exactly 0.
        tgt_tok = jnp.pad(tgt_tok, ((0, n_pad - n_tok), (0, 0)), constant_values=-1)

    # Keep the requested VMEM within the generation's capacity but above the
    # estimated per-step need.
    tile_bytes = row_tile * vocab * itemsize
    est = 5 * tile_bytes + row_tile * vocab * 4 + 4 * row_tile * 512 + (2 << 20)
    vmem_limit = int(min(max(vmem_limit, est), cap - (2 << 20)))

    cost = pl.CostEstimate(
        flops=6 * n_tok * vocab,
        transcendentals=n_tok * vocab + 2 * n_tok,
        bytes_accessed=n_tok * vocab * itemsize + 2 * n_pad * 4,
    )

    out = pl.pallas_call(
        _seq_ce_token_kernel,
        out_shape=jax.ShapeDtypeStruct((n_pad, 1), jnp.float32),
        grid_spec=pltpu.PrefetchScalarGridSpec(
            num_scalar_prefetch=0,
            grid=(num_tiles,),
            in_specs=[
                pl.BlockSpec((row_tile, vocab), lambda i: (i, 0)),
                pl.BlockSpec((row_tile, 1), lambda i: (i, 0)),
            ],
            out_specs=pl.BlockSpec((row_tile, 1), lambda i: (i, 0)),
        ),
        compiler_params=pltpu.CompilerParams(
            # Independent token tiles, no carried accumulator: "parallel"
            # lets v7x shard the grid across both TensorCores.
            dimension_semantics=("parallel",),
            vmem_limit_bytes=vmem_limit,
        ),
        cost_estimate=cost,
    )(logits2d, tgt_tok)

    # Tiny (S, B) epilogue: PyTorch semantics = mean over the FULL seq length.
    per_tok = out[:n_tok, 0].reshape(seq_len, batch)
    return jnp.sum(per_tok, axis=0) / jnp.float32(seq_len)


def _reference(inputs, targets, valid_lengths):
    # pure-JAX reference with identical semantics
    logits = jnp.transpose(inputs, (1, 0, 2)).astype(jnp.float32)   # (B, S, V)
    logp = jax.nn.log_softmax(logits, axis=-1)
    tgt = targets.astype(jnp.int32)
    gathered = jnp.take_along_axis(logp, jnp.clip(tgt, 0)[..., None], axis=-1)[..., 0]
    losses = jnp.where(tgt == -100, 0.0, -gathered)
    s = tgt.shape[1]
    mask = (jnp.arange(s)[None, :] < valid_lengths[:, None]).astype(jnp.float32)
    return (losses * mask).mean(axis=1)


if __name__ == "__main__":
    key = jax.random.PRNGKey(0)
    k1, k2, k3 = jax.random.split(key, 3)

    SEQ, BATCH, VOCAB = 10, 4, 128
    inputs = jax.random.normal(k1, (SEQ, BATCH, VOCAB), dtype=jnp.float32)
    targets = jax.random.randint(k2, (BATCH, SEQ), 0, VOCAB, dtype=jnp.int32)
    targets = targets.at[0, 0].set(-100)   # exercise ignore_index
    valid_lengths = jax.random.randint(k3, (BATCH,), 1, SEQ + 1, dtype=jnp.int32)

    ref = _reference(inputs, targets, valid_lengths)

    # Auto-sized tile (single full-array tile at this size).
    out_auto = jax.block_until_ready(
        sequence_length_cross_entropy_loss(inputs, targets, valid_lengths))
    # Forced small tile: multi-step grid with a partial last logits block.
    out_tiled = jax.block_until_ready(
        sequence_length_cross_entropy_loss(inputs, targets, valid_lengths, row_tile=16))

    assert out_auto.shape == (BATCH,)
    assert jnp.allclose(out_auto, ref, atol=1e-5, rtol=1e-5), (out_auto, ref)
    assert jnp.allclose(out_tiled, ref, atol=1e-5, rtol=1e-5), (out_tiled, ref)

    print("KERNEL_OK")
</pallas_src>

<mosaic_0001>
module attributes {stable_mosaic.version = 11 : i64} {
  func.func @_seq_ce_token_kernel(%arg0: i32, %arg1: memref<40x128xf32, #tpu.memory_space<vmem>>, %arg2: memref<40x1xi32, #tpu.memory_space<vmem>>, %arg3: memref<40x1xf32, #tpu.memory_space<vmem>>) attributes {dimension_semantics = [#tpu.dimension_semantics<parallel>], iteration_bounds = array<i64: 1>, scalar_prefetch = 0 : i64, scratch_operands = 0 : i64, tpu.core_type = #tpu.core_type<tc>, window_params = [{transform_indices = @transform_0, window_bounds = array<i64: 40, 128>}, {transform_indices = @transform_1, window_bounds = array<i64: 40, 1>}, {transform_indices = @transform_2, window_bounds = array<i64: 40, 1>}]} {
    %c0 = arith.constant 0 : index
    %c0_0 = arith.constant 0 : index
    %0 = vector.load %arg1[%c0, %c0_0] : memref<40x128xf32, #tpu.memory_space<vmem>>, vector<40x128xf32>
    %c0_1 = arith.constant 0 : index
    %c0_2 = arith.constant 0 : index
    %1 = vector.load %arg2[%c0_1, %c0_2] : memref<40x1xi32, #tpu.memory_space<vmem>>, vector<40x1xi32>
    %cst = arith.constant dense<0xFF800000> : vector<40xf32>
    %2 = vector.multi_reduction <maximumf>, %0, %cst [1] : vector<40x128xf32> to vector<40xf32>
    %3 = vector.shape_cast %2 : vector<40xf32> to vector<40x1xf32>
    %4 = vector.broadcast %3 : vector<40x1xf32> to vector<40x128xf32>
    %5 = arith.subf %0, %4 : vector<40x128xf32>
    %6 = math.exp %5 : vector<40x128xf32>
    %cst_3 = arith.constant dense<0.000000e+00> : vector<40xf32>
    %7 = vector.multi_reduction <add>, %6, %cst_3 [1] : vector<40x128xf32> to vector<40xf32>
    %8 = vector.shape_cast %7 : vector<40xf32> to vector<40x1xf32>
    %9 = math.log %8 : vector<40x1xf32>
    %10 = tpu.iota {dimensions = array<i32: 1>} : vector<1x128xi32>
    %11 = vector.broadcast %10 : vector<1x128xi32> to vector<40x128xi32>
    %12 = vector.broadcast %1 : vector<40x1xi32> to vector<40x128xi32>
    %13 = arith.cmpi eq, %11, %12 : vector<40x128xi32>
    %c0_i32 = arith.constant 0 : i32
    %14 = arith.sitofp %c0_i32 : i32 to f32
    %15 = vector.broadcast %14 : f32 to vector<40x128xf32>
    %16 = arith.select %13, %5, %15 : vector<40x128xi1>, vector<40x128xf32>
    %cst_4 = arith.constant dense<0.000000e+00> : vector<40xf32>
    %17 = vector.multi_reduction <add>, %16, %cst_4 [1] : vector<40x128xf32> to vector<40xf32>
    %18 = vector.shape_cast %17 : vector<40xf32> to vector<40x1xf32>
    %c0_i32_5 = arith.constant 0 : i32
    %19 = vector.broadcast %c0_i32_5 : i32 to vector<40x1xi32>
    %20 = arith.cmpi sge, %1, %19 : vector<40x1xi32>
    %21 = arith.subf %9, %18 : vector<40x1xf32>
    %cst_6 = arith.constant 0.000000e+00 : f32
    %22 = vector.broadcast %cst_6 : f32 to vector<40x1xf32>
    %23 = arith.select %20, %21, %22 : vector<40x1xi1>, vector<40x1xf32>
    %c0_7 = arith.constant 0 : index
    %c0_8 = arith.constant 0 : index
    %24 = vector.load %arg3[%c0_7, %c0_8] : memref<40x1xf32, #tpu.memory_space<vmem>>, vector<40x1xf32>
    tpu.vector_store %arg3[%c0_7, %c0_8], %23 {strides = array<i32>} : memref<40x1xf32, #tpu.memory_space<vmem>>, vector<40x1xf32>,
    return
  }
  func.func @transform_0(%arg0: i32) -> (i32, i32) {
    %c0_i32 = arith.constant 0 : i32
    %c0_i32_0 = arith.constant 0 : i32
    return %arg0, %c0_i32 : i32, i32
  }
  func.func @transform_1(%arg0: i32) -> (i32, i32) {
    %c0_i32 = arith.constant 0 : i32
    %c0_i32_0 = arith.constant 0 : i32
    return %arg0, %c0_i32 : i32, i32
  }
  func.func @transform_2(%arg0: i32) -> (i32, i32) {
    %c0_i32 = arith.constant 0 : i32
    %c0_i32_0 = arith.constant 0 : i32
    return %arg0, %c0_i32 : i32, i32
  }
}

</mosaic_0001>

<llo_original>
// kernel: tpu_custom_call.1
$region0: #{tpu_custom_call.1}
  #allocation0 [shape = 'u32[]', space=smem, size = 0x4, offset = 0x4, fixed_abs, tag = 'smem constant byte address 0x4 - core index']
  #allocation1 [shape = 'u32[72,128]{1,0:T(1,128)}', space=vmem, size = 0x9000, scoped, tag = 'internal scratch']
  %s0 = inlined_call_operand.vmem [shape: f32[40,128], index: 0, kind: input, shape index: {}]
  %s1 = inlined_call_operand.vmem [shape: s32[40,1], index: 1, kind: input, shape index: {}]
  %s2 = inlined_call_operand.vmem [shape: f32[40,1], index: 2, kind: output, shape index: {}]
  %s3 = sld [smem:[#allocation0]]
  $region18: #{tpu_custom_call.1} parent=0
    _
  %s5 = ssub.s32 1, %s3
  %s6 = scalar_select 0, %s5, %s3
  // Predicated region
  $region2: #{tpu_custom_call.1} parent=0 // pred_check
    _
  $region3: #{tpu_custom_call.1} parent=0 // pred_check_branch
    %8 = sbr.rel (0) target = $region5
  $region4: #{tpu_custom_call.1} parent=0 // pred_region
    _
  $region5: #{tpu_custom_call.1} parent=0 // pred_fallthru
    _
  // Predicated region
  $region6: #{tpu_custom_call.1} parent=0 // pred_check
    _
  $region7: #{tpu_custom_call.1} parent=0 // pred_check_branch
    %10 = sbr.rel (0) target = $region9
  $region8: #{tpu_custom_call.1} parent=0 // pred_region
    _
  $region9: #{tpu_custom_call.1} parent=0 // pred_fallthru
    _
  %v11 = vld [vmem:[%s0] sm:$0xff]
  %v12 = vld [vmem:[%s0 + $0x8] sm:$0xff]
  %v13 = vld [vmem:[%s0 + $0x10] sm:$0xff]
  %v14 = vld [vmem:[%s0 + $0x18] sm:$0xff]
  %v15 = vld [vmem:[%s0 + $0x20] sm:$0xff]
  %v16 = vld [vmem:[%s1] sm:$0xff]
  %v17 = vld [vmem:[%s1 + $0x8] sm:$0xff]
  %v18 = vld [vmem:[%s1 + $0x10] sm:$0xff]
  %v19 = vld [vmem:[%s1 + $0x18] sm:$0xff]
  %v20 = vld [vmem:[%s1 + $0x20] sm:$0xff]
  %21 = vmax.xlane.f32.xlu0 %v11
  %v22 = vpop.xlane.xlu0 %21
  %23 = vmax.xlane.f32.xlu0 %v12
  %v24 = vpop.xlane.xlu0 %23
  %25 = vmax.xlane.f32.xlu0 %v13
  %v26 = vpop.xlane.xlu0 %25
  %27 = vmax.xlane.f32.xlu0 %v14
  %v28 = vpop.xlane.xlu0 %27
  %29 = vmax.xlane.f32.xlu0 %v15
  %v30 = vpop.xlane.xlu0 %29
  %v31 = vsub.f32 %v11, %v22
  %v32 = vsub.f32 %v12, %v24
  %v33 = vsub.f32 %v13, %v26
  %v34 = vsub.f32 %v14, %v28
  %v35 = vsub.f32 %v15, %v30
  %v36 = vmul.f32 %v31, 1.442695
  %v37 = vpow.pop %v36
  %v38 = vmul.f32 %v32, 1.442695
  %v39 = vpow.pop %v38
  %v40 = vmul.f32 %v33, 1.442695
  %v41 = vpow.pop %v40
  %v42 = vmul.f32 %v34, 1.442695
  %v43 = vpow.pop %v42
  %v44 = vmul.f32 %v35, 1.442695
  %v45 = vpow.pop %v44
  %46 = vadd.xlane.f32.xlu0 %v37
  %v47 = vpop.xlane.xlu0 %46
  %48 = vadd.xlane.f32.xlu0 %v39
  %v49 = vpop.xlane.xlu0 %48
  %50 = vadd.xlane.f32.xlu0 %v41
  %v51 = vpop.xlane.xlu0 %50
  %52 = vadd.xlane.f32.xlu0 %v43
  %v53 = vpop.xlane.xlu0 %52
  %54 = vadd.xlane.f32.xlu0 %v45
  %v55 = vpop.xlane.xlu0 %54
  %v56 = vlog2.pop %v47
  %v57 = vmul.f32 %v56, 0.6931472
  %v58 = vlog2.pop %v49
  %v59 = vmul.f32 %v58, 0.6931472
  %v60 = vlog2.pop %v51
  %v61 = vmul.f32 %v60, 0.6931472
  %v62 = vlog2.pop %v53
  %v63 = vmul.f32 %v62, 0.6931472
  %v64 = vlog2.pop %v55
  %v65 = vmul.f32 %v64, 0.6931472
  %v66 = vlaneseq
  %v67 = vand.u32 %v66, 127
  %68 = vset.pattern.permute.xlu0 0
  %69 = vperm.xlu0 %68, %v16
  %v70 = vpop.permute.xlu0 %69
  %71 = vset.pattern.permute.xlu0 0
  %72 = vperm.xlu0 %71, %v17
  %v73 = vpop.permute.xlu0 %72
  %74 = vset.pattern.permute.xlu0 0
  %75 = vperm.xlu0 %74, %v18
  %v76 = vpop.permute.xlu0 %75
  %77 = vset.pattern.permute.xlu0 0
  %78 = vperm.xlu0 %77, %v19
  %v79 = vpop.permute.xlu0 %78
  %80 = vset.pattern.permute.xlu0 0
  %81 = vperm.xlu0 %80, %v20
  %v82 = vpop.permute.xlu0 %81
  %vm83 = vcmp.eq.s32.totalorder %v67, %v70
  %vm84 = vcmp.eq.s32.totalorder %v67, %v73
  %vm85 = vcmp.eq.s32.totalorder %v67, %v76
  %vm86 = vcmp.eq.s32.totalorder %v67, %v79
  %vm87 = vcmp.eq.s32.totalorder %v67, %v82
  %v88 = vsel %vm83, %v31, 0.0
  %v89 = vsel %vm84, %v32, 0.0
  %v90 = vsel %vm85, %v33, 0.0
  %v91 = vsel %vm86, %v34, 0.0
  %v92 = vsel %vm87, %v35, 0.0
  %93 = vadd.xlane.f32.xlu0 %v88
  %v94 = vpop.xlane.xlu0 %93
  %95 = vadd.xlane.f32.xlu0 %v89
  %v96 = vpop.xlane.xlu0 %95
  %97 = vadd.xlane.f32.xlu0 %v90
  %v98 = vpop.xlane.xlu0 %97
  %99 = vadd.xlane.f32.xlu0 %v91
  %v100 = vpop.xlane.xlu0 %99
  %101 = vadd.xlane.f32.xlu0 %v92
  %v102 = vpop.xlane.xlu0 %101
  %vm103 = vcmp.ge.s32.totalorder %v16, 0
  %vm104 = vcmp.ge.s32.totalorder %v17, 0
  %vm105 = vcmp.ge.s32.totalorder %v18, 0
  %vm106 = vcmp.ge.s32.totalorder %v19, 0
  %vm107 = vcmp.ge.s32.totalorder %v20, 0
  %v108 = vsub.f32 %v57, %v94
  %v109 = vsub.f32 %v59, %v96
  %v110 = vsub.f32 %v61, %v98
  %v111 = vsub.f32 %v63, %v100
  %v112 = vsub.f32 %v65, %v102
  %v113 = vsel %vm103, %v108, 0.0
  %v114 = vsel %vm104, %v109, 0.0
  %v115 = vsel %vm105, %v110, 0.0
  %v116 = vsel %vm106, %v111, 0.0
  %v117 = vsel %vm107, %v112, 0.0
  %vm118 = vcmask 7168
  %119 = vst.msk [vmem:[%s2] sm:$0xff] %vm118, %v113
  %120 = vst.msk [vmem:[%s2 + $0x8] sm:$0xff] %vm118, %v114
  %121 = vst.msk [vmem:[%s2 + $0x10] sm:$0xff] %vm118, %v115
  %122 = vst.msk [vmem:[%s2 + $0x18] sm:$0xff] %vm118, %v116
  %123 = vst.msk [vmem:[%s2 + $0x20] sm:$0xff] %vm118, %v117
  // Predicated region
  $region10: #{tpu_custom_call.1} parent=0 // pred_check
    _
  $region11: #{tpu_custom_call.1} parent=0 // pred_check_branch
    %125 = sbr.rel (0) target = $region13
  $region12: #{tpu_custom_call.1} parent=0 // pred_region
    _
  $region13: #{tpu_custom_call.1} parent=0 // pred_fallthru
    _
  // Predicated region
  $region14: #{tpu_custom_call.1} parent=0 // pred_check
    _
  $region15: #{tpu_custom_call.1} parent=0 // pred_check_branch
    %127 = sbr.rel (0) target = $region17
  $region16: #{tpu_custom_call.1} parent=0 // pred_region
    _
  $region17: #{tpu_custom_call.1} parent=0 // pred_fallthru
    _

</llo_original>
